<compile_context>
chip_gen: v5e
topology: v5e:2x2
jax: 0.10.0
libtpu: 0.0.40
codegen_flags: <defaults>
</compile_context>

<pallas_src>
import functools
import math

import jax
import jax.numpy as jnp
from jax.experimental import pallas as pl
from jax.experimental.pallas import tpu as pltpu

_LANE = 128


def _round_up(x, m):
    return ((x + m - 1) // m) * m


def _sublane_for(dtype):
    # dtype-native second-minor tiling: 8 for f32, 16 for bf16, 32 for int8/fp8.
    return max(8, 32 // jnp.dtype(dtype).itemsize)


_PHYS_VMEM_CACHE = [None]


def _physical_vmem_bytes():
    if _PHYS_VMEM_CACHE[0] is None:
        try:
            phys = int(pltpu.get_tpu_info().vmem_capacity_bytes)
        except Exception:
            phys = 0
        if phys < (16 << 20):
            phys = 64 << 20  # v7x-sized fallback: safe on every generation
        _PHYS_VMEM_CACHE[0] = phys
    return _PHYS_VMEM_CACHE[0]


# ---------------------------- kernel bodies ----------------------------

def _fullk_kernel(x_ref, w_ref, b_ref, o_ref, *, precision):
    # x_ref: (tm, K)  w_ref: (K, tn)  b_ref: (1, tn) f32  o_ref: (tm, tn)
    acc = jnp.dot(x_ref[...], w_ref[...],
                  preferred_element_type=jnp.float32, precision=precision)
    o_ref[...] = (acc + b_ref[...]).astype(o_ref.dtype)


def _ktiled_f32_kernel(x_ref, w_ref, b_ref, o_ref, *, precision):
    # f32 output: accumulate straight into the resident output block (no scratch).
    k = pl.program_id(2)

    @pl.when(k == 0)
    def _init():
        o_ref[...] = jnp.broadcast_to(b_ref[...], o_ref.shape)

    o_ref[...] += jnp.dot(x_ref[...], w_ref[...],
                          preferred_element_type=jnp.float32, precision=precision)


def _ktiled_acc_kernel(x_ref, w_ref, b_ref, o_ref, acc_ref, *, precision):
    # Non-f32 output: accumulate in an f32 VMEM scratch, cast once at the end.
    k = pl.program_id(2)

    @pl.when(k == 0)
    def _init():
        acc_ref[...] = jnp.broadcast_to(b_ref[...], acc_ref.shape)

    acc_ref[...] += jnp.dot(x_ref[...], w_ref[...],
                            preferred_element_type=jnp.float32, precision=precision)

    @pl.when(k == pl.num_programs(2) - 1)
    def _fin():
        o_ref[...] = acc_ref[...].astype(o_ref.dtype)


# ------------------------------ wrapper --------------------------------

@functools.partial(jax.jit, static_argnames=("vmem_budget_bytes", "precision"))
def attn_linear(x, weight_t, bias, *, vmem_budget_bytes=None, precision=None):
    """y = x @ weight_t + bias over the last axis of x.

    x:        [..., in_channels]
    weight_t: [in_channels, out_channels]   (torch weight, transposed)
    bias:     [out_channels]
    returns:  [..., out_channels]
    """
    *lead, K = x.shape
    K_w, N = weight_t.shape
    assert K_w == K, "weight_t must be [in_channels, out_channels]"
    M = math.prod(lead) if lead else 1

    dtype = x.dtype
    out_dtype = dtype
    out_is_f32 = jnp.dtype(out_dtype) == jnp.float32
    itemsize = jnp.dtype(dtype).itemsize
    out_itemsize = jnp.dtype(out_dtype).itemsize
    sublane = _sublane_for(dtype)

    x2d = x.reshape(M, K)
    w = weight_t.astype(dtype)                     # match activation dtype (bf16 -> 2x MXU rate)
    b2d = bias.astype(jnp.float32).reshape(1, N)   # f32 bias, added on the f32 accumulator

    # ----------------- generation-aware VMEM budget -----------------
    phys = _physical_vmem_bytes()
    if vmem_budget_bytes is None:
        budget = min(int(phys * 0.70), 100 << 20)  # ~45 MiB on v7x, ~90 MiB on v5e/v6e
    else:
        budget = int(vmem_budget_bytes)
    vmem_limit = int(min(phys * 0.85, max(budget + (8 << 20), 32 << 20)))

    # ----------------------- tile candidates ------------------------
    m_cap = _round_up(M, sublane)
    tm_cands = sorted({min(_round_up(c, sublane), m_cap)
                       for c in (1024, 512, 256, 128, 64, 32, 16, 8)}, reverse=True)

    tn_cands = [c for c in (512, 384, 256, 128) if c <= N]
    if N <= 512 and N not in tn_cands:
        tn_cands.insert(0, N)                      # a single full-width N tile is always legal
    if not tn_cands:
        tn_cands = [N]

    tm_floor = min(128, m_cap)                     # don't accept silly-small M tiles

    # ----------------------- path selection -------------------------
    def bytes_resident(tm):
        # double-buffered x strip + (conservatively 2x) resident W + out tiles + bias
        return (2 * K * N * itemsize + 2 * tm * K * itemsize
                + 2 * tm * N * out_itemsize + 2 * N * 4)

    def bytes_fullk(tm, tn):
        return (2 * (tm * K + K * tn) * itemsize
                + 2 * tm * tn * out_itemsize + 2 * tn * 4)

    def bytes_ktiled(tm, tn, tk):
        acc = 0 if out_is_f32 else tm * tn * 4
        return (2 * (tm * tk + tk * tn) * itemsize
                + 2 * tm * tn * out_itemsize + 2 * tn * 4 + acc)

    plan = None

    # A) weight fully resident in VMEM, only M tiled.
    tm_A = next((t for t in tm_cands if bytes_resident(t) <= budget), None)
    if tm_A is not None and tm_A >= tm_floor:
        plan = ("resident", tm_A)

    # B) full-K strips over an (M, N) grid.
    if plan is None:
        for tn in tn_cands:
            tm_B = next((t for t in tm_cands if bytes_fullk(t, tn) <= budget), None)
            if tm_B is not None and tm_B >= tm_floor:
                plan = ("fullk", tm_B, tn)
                break

    # C) K-tiled with f32 accumulation across the last (arbitrary) grid axis.
    pad_k = False
    if plan is None:
        tk_cands = [c for c in (2048, 1792, 1536, 1280, 1024, 896, 768, 640, 512, 384, 256, 128)
                    if c <= K and K % c == 0]
        if not tk_cands:
            # Rare: no 128-multiple tile divides K -> zero-pad K so junk never
            # enters the accumulator (only this fallback pads the activation).
            pad_k = True
            tk_cands = [1024, 512, 256, 128]
        found = None
        for tn in tn_cands:
            for tm in tm_cands:
                for tk in tk_cands:
                    if bytes_ktiled(tm, tn, tk) <= budget:
                        found = (tm, tn, tk)
                        break
                if found:
                    break
            if found:
                break
        if found is None:                          # absurdly small budget: smallest legal tiles
            found = (tm_cands[-1], tn_cands[-1], tk_cands[-1])
        plan = ("ktiled",) + found

    kind = plan[0]
    cost = pl.CostEstimate(
        flops=2 * M * K * N,
        transcendentals=0,
        bytes_accessed=int((M * K + K * N) * itemsize + M * N * out_itemsize + N * 4),
    )

    # --------------------- build the pallas_call --------------------
    if kind == "resident":
        tm = plan[1]
        gm = pl.cdiv(M, tm)
        grid_spec = pltpu.PrefetchScalarGridSpec(
            num_scalar_prefetch=0,
            grid=(gm,),
            in_specs=[
                pl.BlockSpec((tm, K), lambda i: (i, 0)),   # x streamed exactly once
                pl.BlockSpec((K, N), lambda i: (0, 0)),    # W resident (constant block index)
                pl.BlockSpec((1, N), lambda i: (0, 0)),
            ],
            out_specs=pl.BlockSpec((tm, N), lambda i: (i, 0)),
        )
        kernel = functools.partial(_fullk_kernel, precision=precision)
        dims = ("parallel",)                                # megacore shards disjoint x tiles

    elif kind == "fullk":
        tm, tn = plan[1], plan[2]
        gm, gn = pl.cdiv(M, tm), pl.cdiv(N, tn)
        if M >= N:
            # x-stationary: i outer, j inner -> x fetched once, smaller W re-read gm times.
            grid = (gm, gn)
            in_specs = [
                pl.BlockSpec((tm, K), lambda i, j: (i, 0)),
                pl.BlockSpec((K, tn), lambda i, j: (0, j)),
                pl.BlockSpec((1, tn), lambda i, j: (0, j)),
            ]
            out_spec = pl.BlockSpec((tm, tn), lambda i, j: (i, j))
        else:
            # weight-stationary: j outer, i inner -> W fetched once, smaller x re-read gn times.
            grid = (gn, gm)
            in_specs = [
                pl.BlockSpec((tm, K), lambda j, i: (i, 0)),
                pl.BlockSpec((K, tn), lambda j, i: (0, j)),
                pl.BlockSpec((1, tn), lambda j, i: (0, j)),
            ]
            out_spec = pl.BlockSpec((tm, tn), lambda j, i: (i, j))
        grid_spec = pltpu.PrefetchScalarGridSpec(
            num_scalar_prefetch=0, grid=grid, in_specs=in_specs, out_specs=out_spec)
        kernel = functools.partial(_fullk_kernel, precision=precision)
        dims = ("parallel", "parallel")

    else:  # "ktiled"
        tm, tn, tk = plan[1], plan[2], plan[3]
        Kp = K
        if pad_k:
            Kp = _round_up(K, tk)
            x2d = jnp.pad(x2d, ((0, 0), (0, Kp - K)))
            w = jnp.pad(w, ((0, Kp - K), (0, 0)))
        gm, gn, gk = pl.cdiv(M, tm), pl.cdiv(N, tn), Kp // tk
        in_specs = [
            pl.BlockSpec((tm, tk), lambda i, j, k: (i, k)),
            pl.BlockSpec((tk, tn), lambda i, j, k: (k, j)),
            pl.BlockSpec((1, tn), lambda i, j, k: (0, j)),
        ]
        out_spec = pl.BlockSpec((tm, tn), lambda i, j, k: (i, j))
        if out_is_f32:
            kernel = functools.partial(_ktiled_f32_kernel, precision=precision)
            scratch = []
        else:
            kernel = functools.partial(_ktiled_acc_kernel, precision=precision)
            scratch = [pltpu.VMEM((tm, tn), jnp.float32)]
        grid_spec = pltpu.PrefetchScalarGridSpec(
            num_scalar_prefetch=0, grid=(gm, gn, gk),
            in_specs=in_specs, out_specs=out_spec, scratch_shapes=scratch)
        dims = ("parallel", "parallel", "arbitrary")        # reduction axis last

    out2d = pl.pallas_call(
        kernel,
        out_shape=jax.ShapeDtypeStruct((M, N), out_dtype),
        grid_spec=grid_spec,
        compiler_params=pltpu.CompilerParams(
            dimension_semantics=dims, vmem_limit_bytes=vmem_limit),
        cost_estimate=cost,
    )(x2d, w, b2d)

    return out2d.reshape(*lead, N)


def init_attn_linear_params(key, in_channels, out_channels, dtype=jnp.float32):
    """Matches AttnLinear.__init__:
       weight ~ Normal(0, in_channels**-0.5)      (torch shape [out, in])
       bias   ~ Uniform(-1/sqrt(in), 1/sqrt(in))  (torch nn.Linear default)
    Returned as weight_t = weight.T of shape [in, out]."""
    kw, kb = jax.random.split(key)
    std = in_channels ** (-0.5)
    weight = jax.random.normal(kw, (out_channels, in_channels), dtype) * std
    bound = 1.0 / (in_channels ** 0.5)
    bias = jax.random.uniform(kb, (out_channels,), dtype, minval=-bound, maxval=bound)
    return weight.T, bias


if __name__ == "__main__":
    key = jax.random.PRNGKey(0)
    k_x, k_p, k_x2, k_p2, k_x3 = jax.random.split(key, 5)

    # ---- small shapes implied by the module (tokens x channels); weight-resident path ----
    batch, seq, in_ch, out_ch = 2, 8, 32, 64
    x = jax.random.normal(k_x, (batch, seq, in_ch), jnp.float32)
    w_t, b = init_attn_linear_params(k_p, in_ch, out_ch)
    y = jax.block_until_ready(attn_linear(x, w_t, b))
    y_ref = x @ w_t + b
    assert y.shape == (batch, seq, out_ch)
    assert jnp.max(jnp.abs(y - y_ref)) < 1e-3

    # ---- ragged M: no wrapper-side padding or output slicing (partial last tile) ----
    x_r = jax.random.normal(k_x3, (3, 5, in_ch), jnp.float32)      # M = 15
    y_r = jax.block_until_ready(attn_linear(x_r, w_t, b))
    assert y_r.shape == (3, 5, out_ch)
    assert jnp.max(jnp.abs(y_r - (x_r @ w_t + b))) < 1e-3

    # ---- larger K/N: exercise all three paths (default budget -> weight-resident;
    #      forced small budgets -> streamed full-K and K-tiled accumulate) ----
    b2, s2, in2, out2 = 2, 64, 2560, 256
    x2 = jax.random.normal(k_x2, (b2, s2, in2), jnp.float32)
    w2, bias2 = init_attn_linear_params(k_p2, in2, out2)
    y2_ref = x2 @ w2 + bias2

    y2a = jax.block_until_ready(attn_linear(x2, w2, bias2))                             # path A
    y2b = jax.block_until_ready(attn_linear(x2, w2, bias2, vmem_budget_bytes=6 << 20))  # path B
    y2c = jax.block_until_ready(attn_linear(x2, w2, bias2, vmem_budget_bytes=2 << 20))  # path C (f32, in-place acc)
    for y2 in (y2a, y2b, y2c):
        assert y2.shape == (b2, s2, out2)
        assert jnp.max(jnp.abs(y2 - y2_ref)) < 5e-2    # default MXU precision slack for f32

    # ---- bf16 operands (2x MXU rate, half HBM bytes); K-tiled path with f32 scratch ----
    x2b = x2.astype(jnp.bfloat16)
    w2b = w2.astype(jnp.bfloat16)
    y2d = jax.block_until_ready(attn_linear(x2b, w2b, bias2, vmem_budget_bytes=2 << 20))
    y2d_ref = x2b @ w2b + bias2
    assert y2d.shape == (b2, s2, out2)
    assert jnp.max(jnp.abs(y2d.astype(jnp.float32) - y2d_ref.astype(jnp.float32))) < 1e-1

    print("KERNEL_OK")
</pallas_src>

<mosaic_0001>
module attributes {stable_mosaic.version = 11 : i64} {
  func.func @_fullk_kernel(%arg0: i32, %arg1: memref<16x32xf32, #tpu.memory_space<vmem>>, %arg2: memref<32x64xf32, #tpu.memory_space<vmem>>, %arg3: memref<1x64xf32, #tpu.memory_space<vmem>>, %arg4: memref<16x64xf32, #tpu.memory_space<vmem>>) attributes {dimension_semantics = [#tpu.dimension_semantics<parallel>], iteration_bounds = array<i64: 1>, scalar_prefetch = 0 : i64, scratch_operands = 0 : i64, tpu.core_type = #tpu.core_type<tc>, window_params = [{transform_indices = @transform_0, window_bounds = array<i64: 16, 32>}, {pipeline_mode = #tpu.pipeline_mode<synchronous>, transform_indices = @transform_1, window_bounds = array<i64: 32, 64>}, {pipeline_mode = #tpu.pipeline_mode<synchronous>, transform_indices = @transform_2, window_bounds = array<i64: 1, 64>}, {transform_indices = @transform_3, window_bounds = array<i64: 16, 64>}]} {
    %c0 = arith.constant 0 : index
    %c0_0 = arith.constant 0 : index
    %0 = vector.load %arg1[%c0, %c0_0] : memref<16x32xf32, #tpu.memory_space<vmem>>, vector<16x32xf32>
    %c0_1 = arith.constant 0 : index
    %c0_2 = arith.constant 0 : index
    %1 = vector.load %arg2[%c0_1, %c0_2] : memref<32x64xf32, #tpu.memory_space<vmem>>, vector<32x64xf32>
    %cst = arith.constant dense<0.000000e+00> : vector<16x64xf32>
    %2 = tpu.matmul %0, %1, %cst {dimension_numbers = #tpu.dot_dimension_numbers<[1], [0], [0], [1], [0, 0, 1, 1], [], []>} : vector<16x32xf32>, vector<32x64xf32>, vector<16x64xf32> -> vector<16x64xf32>
    %c0_3 = arith.constant 0 : index
    %c0_4 = arith.constant 0 : index
    %3 = vector.load %arg3[%c0_3, %c0_4] : memref<1x64xf32, #tpu.memory_space<vmem>>, vector<1x64xf32>
    %4 = vector.broadcast %3 : vector<1x64xf32> to vector<16x64xf32>
    %5 = arith.addf %2, %4 : vector<16x64xf32>
    %c0_5 = arith.constant 0 : index
    %c0_6 = arith.constant 0 : index
    %6 = vector.load %arg4[%c0_5, %c0_6] : memref<16x64xf32, #tpu.memory_space<vmem>>, vector<16x64xf32>
    tpu.vector_store %arg4[%c0_5, %c0_6], %5 {strides = array<i32>} : memref<16x64xf32, #tpu.memory_space<vmem>>, vector<16x64xf32>,
    return
  }
  func.func @transform_0(%arg0: i32) -> (i32, i32) {
    %c0_i32 = arith.constant 0 : i32
    %c0_i32_0 = arith.constant 0 : i32
    return %arg0, %c0_i32 : i32, i32
  }
  func.func @transform_1(%arg0: i32) -> (i32, i32) {
    %c0_i32 = arith.constant 0 : i32
    %c0_i32_0 = arith.constant 0 : i32
    %c0_i32_1 = arith.constant 0 : i32
    return %c0_i32, %c0_i32_0 : i32, i32
  }
  func.func @transform_2(%arg0: i32) -> (i32, i32) {
    %c0_i32 = arith.constant 0 : i32
    %c0_i32_0 = arith.constant 0 : i32
    %c0_i32_1 = arith.constant 0 : i32
    return %c0_i32, %c0_i32_0 : i32, i32
  }
  func.func @transform_3(%arg0: i32) -> (i32, i32) {
    %c0_i32 = arith.constant 0 : i32
    %c0_i32_0 = arith.constant 0 : i32
    return %arg0, %c0_i32 : i32, i32
  }
}

</mosaic_0001>

<llo_original>
// kernel: attn_linear.1
$region0: #{attn_linear.1}
  #allocation0 [shape = 'u32[]', space=smem, size = 0x4, offset = 0x4, fixed_abs, tag = 'smem constant byte address 0x4 - core index']
  #allocation1 [shape = 'u32[72,128]{1,0:T(1,128)}', space=vmem, size = 0x9000, scoped, tag = 'internal scratch']
  %s0 = inlined_call_operand.hbm [shape: f32[16,32], index: 0, kind: input, shape index: {}]
  %s1 = inlined_call_operand.hbm [shape: f32[32,64], index: 1, kind: input, shape index: {}]
  %s2 = inlined_call_operand.vmem [shape: f32[1,64], index: 2, kind: input, shape index: {}]
  %s3 = inlined_call_operand.hbm [shape: f32[16,64], index: 3, kind: output, shape index: {}]
  %s4 = sld [smem:[#allocation0]]
  $region30: #{attn_linear.1} parent=0
    _
  %s6 = ssub.s32 1, %s4
  %s7 = scalar_select 0, %s6, %s4
  $region1: #{attn_linear.1} parent=0
    #allocation2 [shape = 'u8[8192]{0}', space=vmem, size = 0x2000, scoped, tag = 'input window, operand 0, single buffered']
    #allocation3 [shape = 's32[1]{0}', space=sflag, size = 0x4, scoped, tag = 'scoped memory for attn_linear.1']
    #allocation4 [shape = 's32[1]{0}', space=sflag, size = 0x4, scoped, tag = 'scoped memory for attn_linear.1']
    #allocation5 [shape = 'u8[16384]{0}', space=vmem, size = 0x4000, scoped, tag = 'input window, operand 1, single buffered']
    #allocation6 [shape = 's32[1]{0}', space=sflag, size = 0x4, scoped, tag = 'scoped memory for attn_linear.1']
    #allocation7 [shape = 'u8[8192]{0}', space=vmem, size = 0x2000, scoped, tag = 'output window, operand 0, single buffered']
    %8 = vsyncpa [#allocation3], 0
    %9 = vsyncpa [#allocation6], 0
    %10 = vsyncpa [#allocation4], 0
    // Predicated region
    $region2: #{attn_linear.1} parent=1 // pred_check
      _
    $region3: #{attn_linear.1} parent=1 // pred_check_branch
      %12 = sbr.rel (0) target = $region5
    $region4: #{attn_linear.1} parent=1 // pred_region
      %14 = vsyncadd [#allocation3], 0
      %s15 = sshll.u32 %s0, 4
      %s16 = int_to_ptr.hbm [resolvable:$true] %s15
      %s17 = sshll.u32 [#allocation2], 4
      %s18 = int_to_ptr.vmem [resolvable:$true] %s17
      %23 = dma.hbm_to_vmem [thread:$0]  %s16, 256, %s18, [#allocation3], 128, 128, 8
    $region5: #{attn_linear.1} parent=1 // pred_fallthru
      _
    // Predicated region
    $region6: #{attn_linear.1} parent=1 // pred_check
      _
    $region7: #{attn_linear.1} parent=1 // pred_check_branch
      %25 = sbr.rel (0) target = $region9
    $region8: #{attn_linear.1} parent=1 // pred_region
      %27 = vsyncadd [#allocation6], 0
      %s28 = sshll.u32 %s1, 4
      %s29 = int_to_ptr.hbm [resolvable:$true] %s28
      %s30 = sshll.u32 [#allocation5], 4
      %s31 = int_to_ptr.vmem [resolvable:$true] %s30
      %36 = dma.hbm_to_vmem [thread:$0]  %s29, 512, %s31, [#allocation6], 128, 128, 8
    $region9: #{attn_linear.1} parent=1 // pred_fallthru
      _
    // Predicated region
    $region10: #{attn_linear.1} parent=1 // pred_check
      _
    $region11: #{attn_linear.1} parent=1 // pred_check_branch
      %38 = sbr.rel (0) target = $region13
    $region12: #{attn_linear.1} parent=1 // pred_region
      _
    $region13: #{attn_linear.1} parent=1 // pred_fallthru
      _
    // Predicated region
    $region14: #{attn_linear.1} parent=1 // pred_check
      _
    $region15: #{attn_linear.1} parent=1 // pred_check_branch
      %40 = sbr.rel (0) target = $region17
    $region16: #{attn_linear.1} parent=1 // pred_region
      %42 = dma.done [#allocation3], 256
    $region17: #{attn_linear.1} parent=1 // pred_fallthru
      _
    // Predicated region
    $region18: #{attn_linear.1} parent=1 // pred_check
      _
    $region19: #{attn_linear.1} parent=1 // pred_check_branch
      %44 = sbr.rel (0) target = $region21
    $region20: #{attn_linear.1} parent=1 // pred_region
      %46 = dma.done [#allocation6], 512
    $region21: #{attn_linear.1} parent=1 // pred_fallthru
      _
    %v47 = vld [vmem:[#allocation2] sm:$0xff]
    %v48 = vld [vmem:[#allocation2 + $0x8] sm:$0xff]
    %v49 = vld [vmem:[#allocation5] sm:$0xff]
    %v50 = vld [vmem:[#allocation5 + $0x8] sm:$0xff]
    %v51 = vld [vmem:[#allocation5 + $0x10] sm:$0xff]
    %v52 = vld [vmem:[#allocation5 + $0x18] sm:$0xff]
    %v53 = vld [vmem:[%s2] sm:$0x1]
    %v55 = vperm.slane %v53, 0
    %vm57 = vcmask 261120
    %v59 = vsel %vm57, %v47, 0
    %v62 = vsel %vm57, %v48, 0
    %64 = vmatpush.msra.mxu0 0.0
    %65 = vmatpush.msra.mxu0 0.0
    %66 = vmatpush.msra.mxu0 0.0
    %67 = vmatpush.msra.mxu0 0.0
    %68 = vmatpush.msra.mxu0 0.0
    %69 = vmatpush.msra.mxu0 0.0
    %70 = vmatpush.msra.mxu0 0.0
    %71 = vmatpush.msra.mxu0 0.0
    %72 = vmatpush.msra.mxu0 0.0
    %73 = vmatpush.msra.mxu0 0.0
    %74 = vmatpush.msra.mxu0 0.0
    %75 = vmatpush.msra.mxu0 0.0
    %76 = vmatpush.msra.mxu0 %v52
    %77 = vmatpush.msra.mxu0 %v51
    %78 = vmatpush.msra.mxu0 %v50
    %79 = vmatpush.msra.mxu0 %v49
    %80 = vmatmul.f32.gmra.mxu0 %v59
    %v81 = vpop.f32.mrf.mxu0
    %v82 = vadd.f32 %v55, %v81
    %83 = vmatmul.f32.gmra.mxu0 %v62
    %v84 = vpop.f32.mrf.mxu0
    %v85 = vadd.f32 %v55, %v84
    %86 = vdwg.mxu0
    %vm87 = vcmask 523264
    %88 = vst.msk [vmem:[#allocation7] sm:$0xff] %vm87, %v82
    %89 = vst.msk [vmem:[#allocation7 + $0x8] sm:$0xff] %vm87, %v85
    // Predicated region
    $region22: #{attn_linear.1} parent=1 // pred_check
      _
    $region23: #{attn_linear.1} parent=1 // pred_check_branch
      %91 = sbr.rel (0) target = $region25
    $region24: #{attn_linear.1} parent=1 // pred_region
      %93 = vsyncadd [#allocation4], 0
      %s94 = sshll.u32 [#allocation7], 4
      %s95 = int_to_ptr.vmem [resolvable:$true] %s94
      %s96 = sshll.u32 %s3, 4
      %s97 = int_to_ptr.hbm [resolvable:$true] %s96
      %102 = dma.vmem_to_hbm [thread:$0]  %s95, 256, %s97, [#allocation4], 128, 128, 8
    $region25: #{attn_linear.1} parent=1 // pred_fallthru
      _
    // Predicated region
    $region26: #{attn_linear.1} parent=1 // pred_check
      _
    $region27: #{attn_linear.1} parent=1 // pred_check_branch
      %104 = sbr.rel (0) target = $region29
    $region28: #{attn_linear.1} parent=1 // pred_region
      %106 = dma.done [#allocation4], 256
    $region29: #{attn_linear.1} parent=1 // pred_fallthru
      _
    %107 = vsyncpa [#allocation3], 1
    %108 = vsyncpa [#allocation6], 1
    %109 = vsyncpa [#allocation4], 1

</llo_original>
